<compile_context>
chip_gen: v5e
topology: v5e:2x2
jax: 0.10.0
libtpu: 0.0.40
codegen_flags: <defaults>
</compile_context>

<pallas_src>
import functools
from typing import NamedTuple

import jax
import jax.numpy as jnp
from jax.experimental import pallas as pl
from jax.experimental.pallas import tpu as pltpu


def _round_up(x, m):
    return ((x + m - 1) // m) * m


def _cdiv(a, b):
    return (a + b - 1) // b


class PackedSwigluWeights(NamedTuple):
    """Expert weights packed once at init (do NOT re-pack every forward)."""
    w12: jax.Array   # (D, num_chunks * 2 * hc): per chunk [W1_k | W2_k], compute dtype
    b12: jax.Array   # (1, num_chunks * 2 * hc): per chunk [b1_k | b2_k], float32
    wp:  jax.Array   # (num_chunks * hc, D): c_proj weight (hidden-padded), compute dtype
    bp:  jax.Array   # (1, D): c_proj bias, float32
    hc:  int         # per-chunk hidden width (multiple of 128)
    hidden: int      # original hidden dim H


def pack_swiglu_weights(w1, b1, w2, b2, wp, bp, *, hc_max=512, compute_dtype=None):
    """Pack SwiGLU expert weights for the Pallas kernel (call ONCE at init).

    compute_dtype: None (keep weight dtype) or e.g. "bfloat16".  bf16 matmuls with f32
    accumulation are recommended on v5e / v6e / v7x (MXU-native, halves weight bytes);
    elementwise math in the kernel stays f32.
    """
    D, H = w1.shape
    assert w2.shape == (D, H) and wp.shape == (H, D)
    cdt = jnp.dtype(compute_dtype) if compute_dtype is not None else jnp.dtype(w1.dtype)

    num_chunks = max(1, _cdiv(H, hc_max))
    hc = _round_up(_cdiv(H, num_chunks), 128)   # lane-aligned h/g slices for any H
    h_pad = num_chunks * hc
    pad = h_pad - H

    w1p = jnp.pad(w1, ((0, 0), (0, pad)))
    w2p = jnp.pad(w2, ((0, 0), (0, pad)))
    b1p = jnp.pad(b1.reshape(-1), (0, pad))
    b2p = jnp.pad(b2.reshape(-1), (0, pad))
    wpp = jnp.pad(wp, ((0, pad), (0, 0)))       # padded hidden rows are zero -> no-op

    w12 = jnp.concatenate(
        [w1p.reshape(D, num_chunks, hc), w2p.reshape(D, num_chunks, hc)], axis=2
    ).reshape(D, num_chunks * 2 * hc).astype(cdt)
    b12 = jnp.concatenate(
        [b1p.reshape(num_chunks, hc), b2p.reshape(num_chunks, hc)], axis=1
    ).reshape(1, num_chunks * 2 * hc).astype(jnp.float32)

    return PackedSwigluWeights(
        w12=w12, b12=b12, wp=wpp.astype(cdt),
        bp=bp.reshape(1, D).astype(jnp.float32), hc=int(hc), hidden=int(H))


def _swiglu_kernel(x_ref, w12_ref, b12_ref, wp_ref, bp_ref, o_ref, acc_ref, *, hc):
    """One (row-tile i, hidden-chunk k) grid step.

    x_ref:   (tm, D)      activations (compute dtype)
    w12_ref: (D, 2*hc)    [W1_k | W2_k] (compute dtype)
    b12_ref: (1, 2*hc)    [b1_k | b2_k] (f32)
    wp_ref:  (hc, D)      c_proj rows for chunk k (compute dtype)
    bp_ref:  (1, D)       c_proj bias (f32)
    o_ref:   (tm, D)      output tile (written on the last chunk only)
    acc_ref: (tm, D) f32  VMEM accumulator across hidden chunks
    """
    k = pl.program_id(1)

    @pl.when(k == 0)
    def _init():
        acc_ref[...] = jnp.zeros_like(acc_ref)

    x = x_ref[...]
    # Fused wide-N gate matmul: one MXU pass produces both h and g, f32 accumulation.
    hg = jnp.dot(x, w12_ref[...], preferred_element_type=jnp.float32) + b12_ref[...]
    h = hg[:, :hc]            # hc is a multiple of 128 -> lane-aligned (no relayout)
    g = hg[:, hc:]
    # SwiGLU in f32: linear_1(x) * silu(linear_2(x)); sigmoid runs on the EUP slot.
    act = h * (g * jax.nn.sigmoid(g))
    # NOTE: for bf16 compute dtype the cast of `act` is one extra rounding vs PyTorch f32.
    acc_ref[...] += jnp.dot(act.astype(wp_ref.dtype), wp_ref[...],
                            preferred_element_type=jnp.float32)

    @pl.when(k == pl.num_programs(1) - 1)
    def _finalize():
        o_ref[...] = (acc_ref[...] + bp_ref[...]).astype(o_ref.dtype)


def _vmem_cap_bytes():
    # Generation-aware budget: ~80% of per-core VMEM (v7x: ~51 of 64 MiB; v5e/v6e:
    # ~102 of 128 MiB), leaving headroom for compiler scratch / spills.
    try:
        return int(pltpu.get_tpu_info().vmem_capacity_bytes * 0.8)
    except Exception:
        return 48 * 1024 * 1024


def _block_spec(block_shape, index_map, *, single_buffer=False):
    if single_buffer:
        try:
            return pl.BlockSpec(block_shape, index_map, pipeline_mode=pl.Buffered(1))
        except (TypeError, AttributeError):
            pass  # older jax without pipeline_mode / Buffered: fall back to default
    return pl.BlockSpec(block_shape, index_map)


@functools.partial(jax.jit, static_argnames=("hc", "tm", "single_buffer_resident"))
def _forward_packed(x, w12, b12, wp, bp, *, hc, tm=None, single_buffer_resident=True):
    B, T, D = x.shape
    M = B * T
    out_dtype = x.dtype
    cdt = w12.dtype
    cs = jnp.dtype(cdt).itemsize
    os_ = jnp.dtype(out_dtype).itemsize
    num_chunks = w12.shape[1] // (2 * hc)
    assert w12.shape == (D, num_chunks * 2 * hc)
    assert wp.shape == (num_chunks * hc, D)

    x2 = x.reshape(M, D).astype(cdt)

    # ---- VMEM budget & row-tile selection -------------------------------------------
    vmem_cap = _vmem_cap_bytes()
    # Constant-index weight specs are single-buffered (pl.Buffered(1)) when resident.
    w_bufs = 1 if (num_chunks == 1 and single_buffer_resident) else 2
    weight_block_bytes = (D * 2 * hc + hc * D) * cs + (2 * hc + D) * 4

    def footprint(rows):
        io_bytes = rows * D * (2 * cs + 2 * os_)            # x + out tiles (2 buffers)
        acc_bytes = rows * D * 4                            # f32 accumulator scratch
        inter_bytes = rows * (3 * hc) * 4 + rows * hc * cs  # hg, act (f32) + cast
        return w_bufs * weight_block_bytes + io_bytes + acc_bytes + inter_bytes + (2 << 20)

    sub = 8 * max(1, 4 // cs)                               # sublane pack: 8 f32, 16 bf16
    tm_req = 512 if tm is None else tm                      # sweep 512-1024 on v5e/v6e
    tm_eff = min(_round_up(tm_req, sub), _round_up(M, sub))
    while tm_eff > sub and footprint(tm_eff) > vmem_cap:
        tm_eff = max(sub, _round_up(tm_eff // 2, sub))
    # Keep >= 2 row tiles where possible so both v7x TensorCores get work.
    if _cdiv(M, tm_eff) < 2:
        half = _round_up(_cdiv(M, 2), sub)
        if sub <= half < tm_eff:
            tm_eff = half
    grid_m = _cdiv(M, tm_eff)      # partial last tile is masked by Pallas (no jnp.pad)

    vmem_limit = int(min(max(footprint(tm_eff), 32 * 1024 * 1024), vmem_cap))

    # ---- Specs ------------------------------------------------------------------------
    single_w = (num_chunks == 1) and single_buffer_resident
    in_specs = [
        # TODO(synk): bump to pl.Buffered(3) if profiling shows exposed x-tile DMA at
        # small D/H (mem-bound regime); neutral at production sizes (MXU-bound).
        pl.BlockSpec((tm_eff, D), lambda i, k: (i, 0)),                       # x tile
        _block_spec((D, 2 * hc), lambda i, k: (0, k), single_buffer=single_w),  # W1_k|W2_k
        _block_spec((1, 2 * hc), lambda i, k: (0, k), single_buffer=single_w),  # b1_k|b2_k
        _block_spec((hc, D), lambda i, k: (k, 0), single_buffer=single_w),      # Wp_k
        _block_spec((1, D), lambda i, k: (0, 0), single_buffer=single_buffer_resident),  # bp
    ]
    out_spec = pl.BlockSpec((tm_eff, D), lambda i, k: (i, 0))

    h_pad = num_chunks * hc
    flops = 6 * M * D * h_pad                  # 2*M*D*2H (gate) + 2*M*H*D (proj)
    transcendentals = M * h_pad                # sigmoid
    bytes_accessed = ((w12.size + wp.size) * cs + (b12.size + bp.size) * 4
                      + M * D * (cs + os_))

    out2 = pl.pallas_call(
        functools.partial(_swiglu_kernel, hc=hc),
        out_shape=jax.ShapeDtypeStruct((M, D), out_dtype),
        grid_spec=pltpu.PrefetchScalarGridSpec(
            num_scalar_prefetch=0,
            grid=(grid_m, num_chunks),
            in_specs=in_specs,
            out_specs=out_spec,
            scratch_shapes=[pltpu.VMEM((tm_eff, D), jnp.float32)],
        ),
        compiler_params=pltpu.CompilerParams(
            dimension_semantics=("parallel", "arbitrary"),
            vmem_limit_bytes=vmem_limit,
        ),
        cost_estimate=pl.CostEstimate(
            flops=flops, transcendentals=transcendentals, bytes_accessed=bytes_accessed),
    )(x2, w12, b12, wp, bp)

    return out2.reshape(B, T, D)


def expert_moe_swiglu_packed(x, packed, *, tm=None, single_buffer_resident=True):
    """Forward with pre-packed weights (preferred: pack once at init)."""
    return _forward_packed(x, packed.w12, packed.b12, packed.wp, packed.bp,
                           hc=packed.hc, tm=tm,
                           single_buffer_resident=single_buffer_resident)


def expert_moe_swiglu(x, w1, b1, w2, b2, wp, bp, *, hc_max=512, tm=None,
                      compute_dtype=None):
    """Convenience wrapper matching the PyTorch module signature.

    NOTE: this re-packs weights every call; for production MoE experts call
    pack_swiglu_weights() once at init and use expert_moe_swiglu_packed().
    """
    packed = pack_swiglu_weights(w1, b1, w2, b2, wp, bp, hc_max=hc_max,
                                 compute_dtype=compute_dtype)
    return expert_moe_swiglu_packed(x, packed, tm=tm)


def _ref_forward_np(x, w1, b1, w2, b2, wp, bp):
    """Float64 host reference of the PyTorch forward."""
    import numpy as np
    x64, w1_, b1_, w2_, b2_, wp_, bp_ = (
        np.asarray(a, dtype=np.float64) for a in (x, w1, b1, w2, b2, wp, bp))
    h = x64 @ w1_ + b1_
    g = x64 @ w2_ + b2_
    act = h * (g / (1.0 + np.exp(-g)))     # h * silu(g)
    return act @ wp_ + bp_


if __name__ == "__main__":
    import numpy as np

    # Small config: n_embd = 32 -> hidden_dim = 4 * 32 = 128; batch=2, seq=8.
    # (Production n_embd should be a multiple of 128 for lane-dense output stores;
    #  D=32 here is still legal because the block equals the full array dim.)
    n_embd = 32
    hidden = 4 * n_embd
    B, T = 2, 8

    key = jax.random.PRNGKey(0)
    kx, k1, kb1, k2, kb2, kp, kbp = jax.random.split(key, 7)

    x = jax.random.normal(kx, (B, T, n_embd), dtype=jnp.float32)

    # PyTorch-like init: uniform(-1/sqrt(fan_in), 1/sqrt(fan_in)).
    s1 = 1.0 / jnp.sqrt(n_embd)
    sp = 1.0 / jnp.sqrt(hidden)
    w1 = jax.random.uniform(k1, (n_embd, hidden), jnp.float32, -s1, s1)
    b1 = jax.random.uniform(kb1, (hidden,), jnp.float32, -s1, s1)
    w2 = jax.random.uniform(k2, (n_embd, hidden), jnp.float32, -s1, s1)
    b2 = jax.random.uniform(kb2, (hidden,), jnp.float32, -s1, s1)
    wp = jax.random.uniform(kp, (hidden, n_embd), jnp.float32, -sp, sp)
    bp = jax.random.uniform(kbp, (n_embd,), jnp.float32, -sp, sp)

    ref = _ref_forward_np(x, w1, b1, w2, b2, wp, bp)

    # Tolerances: the TPU MXU may evaluate f32 matmuls in reduced precision by default;
    # these bounds absorb that while still catching any packing / indexing bug.
    # 1) f32 compute, single hidden chunk (resident, single-buffered weights).
    packed_f32 = pack_swiglu_weights(w1, b1, w2, b2, wp, bp)
    out = jax.block_until_ready(expert_moe_swiglu_packed(x, packed_f32))
    assert out.shape == (B, T, n_embd)
    err = float(np.max(np.abs(np.asarray(out, dtype=np.float64) - ref)))
    assert err < 1e-2, f"f32 path max abs err {err}"

    # 2) f32 compute, forced multi-chunk hidden reduction (exercises the accumulator).
    packed_chunked = pack_swiglu_weights(w1, b1, w2, b2, wp, bp, hc_max=64)
    out_c = jax.block_until_ready(expert_moe_swiglu_packed(x, packed_chunked))
    err_c = float(np.max(np.abs(np.asarray(out_c, dtype=np.float64) - ref)))
    assert err_c < 1e-2, f"chunked path max abs err {err_c}"

    # 3) bf16 matmuls (recommended on v5e/v6e/v7x), f32 accumulation & elementwise.
    packed_bf16 = pack_swiglu_weights(w1, b1, w2, b2, wp, bp, compute_dtype="bfloat16")
    out_b = jax.block_until_ready(expert_moe_swiglu_packed(x, packed_bf16))
    err_b = float(np.max(np.abs(np.asarray(out_b, dtype=np.float64) - ref)))
    assert err_b < 5e-2, f"bf16 path max abs err {err_b}"

    print("KERNEL_OK")
</pallas_src>

<mosaic_0001>
module attributes {stable_mosaic.version = 11 : i64} {
  func.func @_swiglu_kernel(%arg0: i32, %arg1: i32, %arg2: memref<8x32xf32, #tpu.memory_space<vmem>>, %arg3: memref<32x256xf32, #tpu.memory_space<vmem>>, %arg4: memref<1x256xf32, #tpu.memory_space<vmem>>, %arg5: memref<128x32xf32, #tpu.memory_space<vmem>>, %arg6: memref<1x32xf32, #tpu.memory_space<vmem>>, %arg7: memref<8x32xf32, #tpu.memory_space<vmem>>, %arg8: memref<8x32xf32, #tpu.memory_space<vmem>>) attributes {dimension_semantics = [#tpu.dimension_semantics<parallel>, #tpu.dimension_semantics<arbitrary>], iteration_bounds = array<i64: 2, 1>, scalar_prefetch = 0 : i64, scratch_operands = 1 : i64, tpu.core_type = #tpu.core_type<tc>, window_params = [{transform_indices = @transform_0, window_bounds = array<i64: 8, 32>}, {pipeline_mode = #tpu.pipeline_mode<synchronous>, transform_indices = @transform_1, window_bounds = array<i64: 32, 256>}, {pipeline_mode = #tpu.pipeline_mode<synchronous>, transform_indices = @transform_2, window_bounds = array<i64: 1, 256>}, {pipeline_mode = #tpu.pipeline_mode<synchronous>, transform_indices = @transform_3, window_bounds = array<i64: 128, 32>}, {pipeline_mode = #tpu.pipeline_mode<synchronous>, transform_indices = @transform_4, window_bounds = array<i64: 1, 32>}, {transform_indices = @transform_5, window_bounds = array<i64: 8, 32>}]} {
    %c0_i32 = arith.constant 0 : i32
    %0 = arith.cmpi eq, %arg1, %c0_i32 : i32
    %1 = arith.extui %0 : i1 to i32
    %c0_i32_0 = arith.constant 0 : i32
    %2 = arith.cmpi ne, %1, %c0_i32_0 : i32
    scf.if %2 {
      %cst_16 = arith.constant 0.000000e+00 : f32
      %26 = vector.broadcast %cst_16 : f32 to vector<8x32xf32>
      %c0_17 = arith.constant 0 : index
      %c0_18 = arith.constant 0 : index
      %27 = vector.load %arg8[%c0_17, %c0_18] : memref<8x32xf32, #tpu.memory_space<vmem>>, vector<8x32xf32>
      tpu.vector_store %arg8[%c0_17, %c0_18], %26 {strides = array<i32>} : memref<8x32xf32, #tpu.memory_space<vmem>>, vector<8x32xf32>,
    } else {
    }
    %c0 = arith.constant 0 : index
    %c0_1 = arith.constant 0 : index
    %3 = vector.load %arg2[%c0, %c0_1] : memref<8x32xf32, #tpu.memory_space<vmem>>, vector<8x32xf32>
    %c0_2 = arith.constant 0 : index
    %c0_3 = arith.constant 0 : index
    %4 = vector.load %arg3[%c0_2, %c0_3] : memref<32x256xf32, #tpu.memory_space<vmem>>, vector<32x256xf32>
    %cst = arith.constant dense<0.000000e+00> : vector<8x256xf32>
    %5 = tpu.matmul %3, %4, %cst {dimension_numbers = #tpu.dot_dimension_numbers<[1], [0], [0], [1], [0, 0, 1, 1], [], []>} : vector<8x32xf32>, vector<32x256xf32>, vector<8x256xf32> -> vector<8x256xf32>
    %c0_4 = arith.constant 0 : index
    %c0_5 = arith.constant 0 : index
    %6 = vector.load %arg4[%c0_4, %c0_5] : memref<1x256xf32, #tpu.memory_space<vmem>>, vector<1x256xf32>
    %7 = vector.broadcast %6 : vector<1x256xf32> to vector<8x256xf32>
    %8 = arith.addf %5, %7 : vector<8x256xf32>
    %9 = vector.extract_strided_slice %8 {offsets = [0, 0], sizes = [8, 128], strides = [1, 1]} : vector<8x256xf32> to vector<8x128xf32>
    %10 = vector.extract_strided_slice %8 {offsets = [0, 128], sizes = [8, 128], strides = [1, 1]} : vector<8x256xf32> to vector<8x128xf32>
    %11 = arith.negf %10 : vector<8x128xf32>
    %12 = math.exp %11 : vector<8x128xf32>
    %cst_6 = arith.constant 1.000000e+00 : f32
    %13 = vector.broadcast %cst_6 : f32 to vector<8x128xf32>
    %14 = arith.addf %13, %12 : vector<8x128xf32>
    %15 = arith.divf %13, %14 : vector<8x128xf32>
    %16 = arith.mulf %10, %15 : vector<8x128xf32>
    %17 = arith.mulf %9, %16 : vector<8x128xf32>
    %c0_7 = arith.constant 0 : index
    %c0_8 = arith.constant 0 : index
    %18 = vector.load %arg8[%c0_7, %c0_8] : memref<8x32xf32, #tpu.memory_space<vmem>>, vector<8x32xf32>
    %c0_9 = arith.constant 0 : index
    %c0_10 = arith.constant 0 : index
    %19 = vector.load %arg5[%c0_9, %c0_10] : memref<128x32xf32, #tpu.memory_space<vmem>>, vector<128x32xf32>
    %cst_11 = arith.constant dense<0.000000e+00> : vector<8x32xf32>
    %20 = tpu.matmul %17, %19, %cst_11 {dimension_numbers = #tpu.dot_dimension_numbers<[1], [0], [0], [1], [0, 0, 1, 1], [], []>} : vector<8x128xf32>, vector<128x32xf32>, vector<8x32xf32> -> vector<8x32xf32>
    %21 = arith.addf %18, %20 : vector<8x32xf32>
    %c0_12 = arith.constant 0 : index
    %c0_13 = arith.constant 0 : index
    %22 = vector.load %arg8[%c0_12, %c0_13] : memref<8x32xf32, #tpu.memory_space<vmem>>, vector<8x32xf32>
    tpu.vector_store %arg8[%c0_12, %c0_13], %21 {strides = array<i32>} : memref<8x32xf32, #tpu.memory_space<vmem>>, vector<8x32xf32>,
    %c0_i32_14 = arith.constant 0 : i32
    %23 = arith.cmpi eq, %arg1, %c0_i32_14 : i32
    %24 = arith.extui %23 : i1 to i32
    %c0_i32_15 = arith.constant 0 : i32
    %25 = arith.cmpi ne, %24, %c0_i32_15 : i32
    scf.if %25 {
      %c0_16 = arith.constant 0 : index
      %c0_17 = arith.constant 0 : index
      %26 = vector.load %arg8[%c0_16, %c0_17] : memref<8x32xf32, #tpu.memory_space<vmem>>, vector<8x32xf32>
      %c0_18 = arith.constant 0 : index
      %c0_19 = arith.constant 0 : index
      %27 = vector.load %arg6[%c0_18, %c0_19] : memref<1x32xf32, #tpu.memory_space<vmem>>, vector<1x32xf32>
      %28 = vector.broadcast %27 : vector<1x32xf32> to vector<8x32xf32>
      %29 = arith.addf %26, %28 : vector<8x32xf32>
      %c0_20 = arith.constant 0 : index
      %c0_21 = arith.constant 0 : index
      %30 = vector.load %arg7[%c0_20, %c0_21] : memref<8x32xf32, #tpu.memory_space<vmem>>, vector<8x32xf32>
      tpu.vector_store %arg7[%c0_20, %c0_21], %29 {strides = array<i32>} : memref<8x32xf32, #tpu.memory_space<vmem>>, vector<8x32xf32>,
    } else {
    }
    return
  }
  func.func @transform_0(%arg0: i32, %arg1: i32) -> (i32, i32) {
    %c0_i32 = arith.constant 0 : i32
    %c0_i32_0 = arith.constant 0 : i32
    return %arg0, %c0_i32 : i32, i32
  }
  func.func @transform_1(%arg0: i32, %arg1: i32) -> (i32, i32) {
    %c0_i32 = arith.constant 0 : i32
    %c0_i32_0 = arith.constant 0 : i32
    return %c0_i32, %arg1 : i32, i32
  }
  func.func @transform_2(%arg0: i32, %arg1: i32) -> (i32, i32) {
    %c0_i32 = arith.constant 0 : i32
    %c0_i32_0 = arith.constant 0 : i32
    return %c0_i32, %arg1 : i32, i32
  }
  func.func @transform_3(%arg0: i32, %arg1: i32) -> (i32, i32) {
    %c0_i32 = arith.constant 0 : i32
    %c0_i32_0 = arith.constant 0 : i32
    return %arg1, %c0_i32 : i32, i32
  }
  func.func @transform_4(%arg0: i32, %arg1: i32) -> (i32, i32) {
    %c0_i32 = arith.constant 0 : i32
    %c0_i32_0 = arith.constant 0 : i32
    %c0_i32_1 = arith.constant 0 : i32
    return %c0_i32, %c0_i32_0 : i32, i32
  }
  func.func @transform_5(%arg0: i32, %arg1: i32) -> (i32, i32) {
    %c0_i32 = arith.constant 0 : i32
    %c0_i32_0 = arith.constant 0 : i32
    return %arg0, %c0_i32 : i32, i32
  }
}

</mosaic_0001>

<llo_original>
// kernel: _forward_packed.1
$region0: #{_forward_packed.1}
  #allocation0 [shape = 'u32[]', space=smem, size = 0x4, offset = 0x4, fixed_abs, tag = 'smem constant byte address 0x4 - core index']
  #allocation1 [shape = 'u32[72,128]{1,0:T(1,128)}', space=vmem, size = 0x9000, scoped, tag = 'internal scratch']
  #allocation2 [shape = 'f32[8,32]{1,0:T(8,128)}', space=vmem, size = 0x1000, scoped, tag = 'scratch operand']
  %s0 = inlined_call_operand.vmem [shape: f32[16,32], index: 0, kind: input, shape index: {}]
  %s1 = inlined_call_operand.vmem [shape: f32[32,256], index: 1, kind: input, shape index: {}]
  %s2 = inlined_call_operand.vmem [shape: f32[1,256], index: 2, kind: input, shape index: {}]
  %s3 = inlined_call_operand.vmem [shape: f32[128,32], index: 3, kind: input, shape index: {}]
  %s4 = inlined_call_operand.vmem [shape: f32[1,32], index: 4, kind: input, shape index: {}]
  %s5 = inlined_call_operand.hbm [shape: f32[16,32], index: 5, kind: output, shape index: {}]
  %s6 = sld [smem:[#allocation0]]
  $region61: #{_forward_packed.1} parent=0
    _
  %s8 = ssub.s32 1, %s6
  %s9 = scalar_select 0, %s8, %s6
  $region1: #{_forward_packed.1} parent=0
    #allocation3 [shape = 'u8[8192]{0}', space=vmem, size = 0x2000, scoped, tag = 'output window, operand 0']
    #allocation4 [shape = 's32[2]{0}', space=sflag, size = 0x8, scoped, tag = 'scoped memory for _forward_packed.1']
    %10 = vsyncpa [#allocation4], 0
    %s11 = scalar_lea.sflag [#allocation4], 1
    %12 = vsyncpa %s11, 0
    loop: start=0, step=1, limit=4
    $region2: #{_forward_packed.1} parent=1 // loop_pre_header
      _
    $region3: #{_forward_packed.1} parent=1 // loop_header
      %s14 = sphi 0, %s18
      %p15 = scmp.ge.s32.totalorder %s14, 4
      %s21 = sphi 0, %s33
      %s22 = sphi 0, %s29
      %s23 = sphi 0, %s21
      %s24 = sphi 0, %s22
      %s25 = sphi 0, %s23
      %s26 = sphi 0, %s24
      %s36 = sphi 0, %s38
      %s39 = sphi 0, %s36
      %s40 = sphi 0, %s39
      %s56 = sphi 0, %s40
      %s62 = sphi 0, %s64
      %s65 = sphi 0, %s62
      %s66 = sphi 0, %s65
      %s82 = sphi 0, %s66
      %s88 = sphi 0, %s90
      %s91 = sphi 0, %s88
      %s92 = sphi 0, %s91
      %s108 = sphi 0, %s92
      %s114 = sphi 0, %s116
      %s117 = sphi 0, %s114
      %s118 = sphi 0, %s117
      %s134 = sphi 0, %s118
      %s138 = sphi 0, %s138
      %s140 = sphi 0, %s138
      %s141 = sphi 0, %s140
      %s155 = sphi 0, %s141
      %s161 = sphi 0, %s163
      %s164 = sphi 0, %s161
      %s165 = sphi 0, %s164
      %s181 = sphi 0, %s165
    $region4: #{_forward_packed.1} parent=1 // loop_header_branch
      %17 = sbr.rel (%p15) target = $region8
    $region5: #{_forward_packed.1} parent=1 // loop_body
      %s19 = ssub.s32 %s14, 1
      %s20 = ssub.s32 %s14, 2
      %s27 = sadd.s32 1, %s22
      %p28 = scmp.ge.s32.totalorder %s27, 1
      %s29 = scalar_select %p28, 0, %s27
      %s30 = sadd.s32 1, %s21
      %s31 = scalar_select %p28, %s30, %s21
      %p32 = scmp.ge.s32.totalorder %s31, 2
      %s33 = scalar_select %p32, 0, %s31
      %s34 = ssub.s32 %s21, %s33
      %p35 = scmp.eq.s32.totalorder %s34, 0
      %s37 = sadd.s32 %s36, 1
      %s38 = scalar_select %p35, %s36, %s37
      %p41 = pneg %p35
      %p42 = scmp.eq.s32.totalorder %s14, 1
      %p43 = por %p41, %p42
      %p44 = scmp.ne.s32.totalorder %s36, %s39
      %p45 = scmp.eq.s32.totalorder %s14, 0
      %p46 = por %p44, %p45
      %p47 = scmp.ne.s32.totalorder %s36, %s39
      %p48 = scmp.eq.s32.totalorder %s19, 1
      %p49 = por %p47, %p48
      %p50 = scmp.ne.s32.totalorder %s39, %s40
      %p51 = scmp.eq.s32.totalorder %s19, 0
      %p52 = por %p50, %p51
      %p53 = scmp.ne.s32.totalorder %s39, %s40
      %p54 = scmp.eq.s32.totalorder %s20, 1
      %p55 = por %p53, %p54
      %p57 = scmp.ne.s32.totalorder %s40, %s56
      %p58 = scmp.eq.s32.totalorder %s20, 0
      %p59 = por %p57, %p58
      %s60 = ssub.s32 %s22, %s29
      %p61 = scmp.eq.s32.totalorder %s60, 0
      %s63 = sadd.s32 %s62, 1
      %s64 = scalar_select %p61, %s62, %s63
      %p67 = pneg %p61
      %p68 = scmp.eq.s32.totalorder %s14, 1
      %p69 = por %p67, %p68
      %p70 = scmp.ne.s32.totalorder %s62, %s65
      %p71 = scmp.eq.s32.totalorder %s14, 0
      %p72 = por %p70, %p71
      %p73 = scmp.ne.s32.totalorder %s62, %s65
      %p74 = scmp.eq.s32.totalorder %s19, 1
      %p75 = por %p73, %p74
      %p76 = scmp.ne.s32.totalorder %s65, %s66
      %p77 = scmp.eq.s32.totalorder %s19, 0
      %p78 = por %p76, %p77
      %p79 = scmp.ne.s32.totalorder %s65, %s66
      %p80 = scmp.eq.s32.totalorder %s20, 1
      %p81 = por %p79, %p80
      %p83 = scmp.ne.s32.totalorder %s66, %s82
      %p84 = scmp.eq.s32.totalorder %s20, 0
      %p85 = por %p83, %p84
      %s86 = ssub.s32 %s22, %s29
      %p87 = scmp.eq.s32.totalorder %s86, 0
      %s89 = sadd.s32 %s88, 1
      %s90 = scalar_select %p87, %s88, %s89
      %p93 = pneg %p87
      %p94 = scmp.eq.s32.totalorder %s14, 1
      %p95 = por %p93, %p94
      %p96 = scmp.ne.s32.totalorder %s88, %s91
      %p97 = scmp.eq.s32.totalorder %s14, 0
      %p98 = por %p96, %p97
      %p99 = scmp.ne.s32.totalorder %s88, %s91
      %p100 = scmp.eq.s32.totalorder %s19, 1
      %p101 = por %p99, %p100
      %p102 = scmp.ne.s32.totalorder %s91, %s92
      %p103 = scmp.eq.s32.totalorder %s19, 0
      %p104 = por %p102, %p103
      %p105 = scmp.ne.s32.totalorder %s91, %s92
      %p106 = scmp.eq.s32.totalorder %s20, 1
      %p107 = por %p105, %p106
      %p109 = scmp.ne.s32.totalorder %s92, %s108
      %p110 = scmp.eq.s32.totalorder %s20, 0
      %p111 = por %p109, %p110
      %s112 = ssub.s32 %s22, %s29
      %p113 = scmp.eq.s32.totalorder %s112, 0
      %s115 = sadd.s32 %s114, 1
      %s116 = scalar_select %p113, %s114, %s115
      %p119 = pneg %p113
      %p120 = scmp.eq.s32.totalorder %s14, 1
      %p121 = por %p119, %p120
      %p122 = scmp.ne.s32.totalorder %s114, %s117
      %p123 = scmp.eq.s32.totalorder %s14, 0
      %p124 = por %p122, %p123
      %p125 = scmp.ne.s32.totalorder %s114, %s117
      %p126 = scmp.eq.s32.totalorder %s19, 1
      %p127 = por %p125, %p126
      %p128 = scmp.ne.s32.totalorder %s117, %s118
      %p129 = scmp.eq.s32.totalorder %s19, 0
      %p130 = por %p128, %p129
      %p131 = scmp.ne.s32.totalorder %s117, %s118
      %p132 = scmp.eq.s32.totalorder %s20, 1
      %p133 = por %p131, %p132
      %p135 = scmp.ne.s32.totalorder %s118, %s134
      %p136 = scmp.eq.s32.totalorder %s20, 0
      %p137 = por %p135, %p136
      %s139 = sadd.s32 %s138, 1
      %p142 = scmp.eq.s32.totalorder %s14, 1
      %p143 = scmp.ne.s32.totalorder %s138, %s140
      %p144 = scmp.eq.s32.totalorder %s14, 0
      %p145 = por %p143, %p144
      %p146 = scmp.ne.s32.totalorder %s138, %s140
      %p147 = scmp.eq.s32.totalorder %s19, 1
      %p148 = por %p146, %p147
      %p149 = scmp.ne.s32.totalorder %s140, %s141
      %p150 = scmp.eq.s32.totalorder %s19, 0
      %p151 = por %p149, %p150
      %p152 = scmp.ne.s32.totalorder %s140, %s141
      %p153 = scmp.eq.s32.totalorder %s20, 1
      %p154 = por %p152, %p153
      %p156 = scmp.ne.s32.totalorder %s141, %s155
      %p157 = scmp.eq.s32.totalorder %s20, 0
      %p158 = por %p156, %p157
      %s159 = ssub.s32 %s21, %s33
      %p160 = scmp.eq.s32.totalorder %s159, 0
      %s162 = sadd.s32 %s161, 1
      %s163 = scalar_select %p160, %s161, %s162
      %p166 = pneg %p160
      %p167 = scmp.eq.s32.totalorder %s14, 1
      %p168 = por %p166, %p167
      %p169 = scmp.ne.s32.totalorder %s161, %s164
      %p170 = scmp.eq.s32.totalorder %s14, 0
      %p171 = por %p169, %p170
      %p172 = scmp.ne.s32.totalorder %s161, %s164
      %p173 = scmp.eq.s32.totalorder %s19, 1
      %p174 = por %p172, %p173
      %p175 = scmp.ne.s32.totalorder %s164, %s165
      %p176 = scmp.eq.s32.totalorder %s19, 0
      %p177 = por %p175, %p176
      %p178 = scmp.ne.s32.totalorder %s164, %s165
      %p179 = scmp.eq.s32.totalorder %s20, 1
      %p180 = por %p178, %p179
      %p182 = scmp.ne.s32.totalorder %s165, %s181
      %p183 = scmp.eq.s32.totalorder %s20, 0
      %p184 = por %p182, %p183
      %p185 = scmp.le.s32.totalorder 1, %s14
      %p186 = scmp.lt.s32.totalorder %s14, 3
      %p187 = pnand %p185, %p186
      %p188 = pneg %p187
      // Predicated region
      $region9: #{_forward_packed.1} parent=5 // pred_check
        _
      $region10: #{_forward_packed.1} parent=5 // pred_check_branch
        %190 = sbr.rel (%p187) target = $region12
      $region11: #{_forward_packed.1} parent=5 // pred_region
        %s191 = ssub.s32 %s14, 1
        // Predicated region
        $region13: #{_forward_packed.1} parent=11 // pred_check
          %p192 = pneg %p78
        $region14: #{_forward_packed.1} parent=11 // pred_check_branch
          %194 = sbr.rel (%p192) target = $region16
        $region15: #{_forward_packed.1} parent=11 // pred_region
          %s195 = smul.u32 2, %s24
          %p196 = scmp.lt.s32.totalorder %s195, 1
          %s197 = scalar_select %p196, %s195, 1
          %s198 = smul.addr %s197, 8
          %s199 = scalar_lea.vmem %s1, %s198
          %s200 = smul.u32 2, %s24
        $region16: #{_forward_packed.1} parent=11 // pred_fallthru
          _
        // Predicated region
        $region17: #{_forward_packed.1} parent=11 // pred_check
          %p201 = pneg %p104
        $region18: #{_forward_packed.1} parent=11 // pred_check_branch
          %203 = sbr.rel (%p201) target = $region20
        $region19: #{_forward_packed.1} parent=11 // pred_region
          %s204 = smul.u32 2, %s24
          %p205 = scmp.lt.s32.totalorder %s204, 1
          %s206 = scalar_select %p205, %s204, 1
          %s207 = scalar_lea.vmem %s2, %s206
          %s208 = smul.u32 2, %s24
        $region20: #{_forward_packed.1} parent=11 // pred_fallthru
          _
        // Predicated region
        $region21: #{_forward_packed.1} parent=11 // pred_check
          %p209 = pneg %p130
        $region22: #{_forward_packed.1} parent=11 // pred_check_branch
          %211 = sbr.rel (%p209) target = $region24
        $region23: #{_forward_packed.1} parent=11 // pred_region
          %s212 = smul.u32 16, %s24
          %p213 = scmp.lt.s32.totalorder %s212, 15
          %s214 = scalar_select %p213, %s212, 15
          %s215 = smul.addr %s214, 8
          %s216 = scalar_lea.vmem %s3, %s215
          %s217 = smul.u32 16, %s24
        $region24: #{_forward_packed.1} parent=11 // pred_fallthru
          _
        // Predicated region
        $region25: #{_forward_packed.1} parent=11 // pred_check
          %p218 = pneg %p151
        $region26: #{_forward_packed.1} parent=11 // pred_check_branch
          %220 = sbr.rel (%p218) target = $region28
        $region27: #{_forward_packed.1} parent=11 // pred_region
          _
        $region28: #{_forward_packed.1} parent=11 // pred_fallthru
          _
      $region12: #{_forward_packed.1} parent=5 // pred_fallthru
        _
      %p221 = scmp.lt.s32.totalorder %s14, 2
      // Predicated region
      $region29: #{_forward_packed.1} parent=5 // pred_check
        %p222 = pneg %p221
      $region30: #{_forward_packed.1} parent=5 // pred_check_branch
        %224 = sbr.rel (%p222) target = $region32
      $region31: #{_forward_packed.1} parent=5 // pred_region
        // Predicated region
        $region33: #{_forward_packed.1} parent=31 // pred_check
          %p225 = pneg %p46
        $region34: #{_forward_packed.1} parent=31 // pred_check_branch
          %227 = sbr.rel (%p225) target = $region36
        $region35: #{_forward_packed.1} parent=31 // pred_region
          %p228 = scmp.lt.s32.totalorder %s21, 1
          %s229 = scalar_select %p228, %s21, 1
          %s230 = smul.addr %s229, 8
          %s231 = scalar_lea.vmem %s0, %s230
        $region36: #{_forward_packed.1} parent=31 // pred_fallthru
          _
      $region32: #{_forward_packed.1} parent=5 // pred_fallthru
        _
      %p232 = scmp.le.s32.totalorder 1, %s14
      %p233 = scmp.lt.s32.totalorder %s14, 3
      %p234 = pnand %p232, %p233
      %p235 = pneg %p234
      // Predicated region
      $region37: #{_forward_packed.1} parent=5 // pred_check
        _
      $region38: #{_forward_packed.1} parent=5 // pred_check_branch
        %237 = sbr.rel (%p234) target = $region40
      $region39: #{_forward_packed.1} parent=5 // pred_region
        %s238 = ssub.s32 %s14, 1
        %p239 = scmp.lt.s32.totalorder %s23, 1
        %s240 = scalar_select %p239, %s23, 1
        %s241 = smul.addr %s240, 8
        %s242 = scalar_lea.vmem %s0, %s241
        %p243 = pneg %p52
        %p244 = pneg %p49
        %s245 = smul.u32 2, %s24
        %p246 = scmp.lt.s32.totalorder %s245, 1
        %s247 = scalar_select %p246, %s245, 1
        %s248 = smul.addr %s247, 8
        %s249 = scalar_lea.vmem %s1, %s248
        %p250 = pneg %p78
        %p251 = pneg %p75
        %s252 = smul.u32 2, %s24
        %p253 = scmp.lt.s32.totalorder %s252, 1
        %s254 = scalar_select %p253, %s252, 1
        %s255 = scalar_lea.vmem %s2, %s254
        %p256 = pneg %p104
        %p257 = pneg %p101
        %s258 = smul.u32 16, %s24
        %p259 = scmp.lt.s32.totalorder %s258, 15
        %s260 = scalar_select %p259, %s258, 15
        %s261 = smul.addr %s260, 8
        %s262 = scalar_lea.vmem %s3, %s261
        %p263 = pneg %p130
        %p264 = pneg %p127
        %p265 = pneg %p151
        %p266 = pneg %p148
        %p267 = pneg %p177
        %p268 = pneg %p174
        %s269 = sand.u32 %s164, 1
        %s270 = scalar_lea.sflag [#allocation4], %s269
        %s271 = sand.u32 %s164, 1
        %s272 = smul.addr %s271, 8
        %s273 = scalar_lea.vmem [#allocation3], %s272
        %p274 = scmp.lt.s32.totalorder %s23, 1
        %s275 = scalar_select %p274, %s23, 1
        %s276 = smul.addr %s275, 8
        %s277 = scalar_lea.vmem %s0, %s276
        %s278 = smul.u32 2, %s24
        %p279 = scmp.lt.s32.totalorder %s278, 1
        %s280 = scalar_select %p279, %s278, 1
        %s281 = smul.addr %s280, 8
        %s282 = scalar_lea.vmem %s1, %s281
        %s283 = smul.u32 2, %s24
        %s284 = smul.u32 2, %s24
        %p285 = scmp.lt.s32.totalorder %s284, 1
        %s286 = scalar_select %p285, %s284, 1
        %s287 = scalar_lea.vmem %s2, %s286
        %s288 = smul.u32 2, %s24
        %s289 = smul.u32 16, %s24
        %p290 = scmp.lt.s32.totalorder %s289, 15
        %s291 = scalar_select %p290, %s289, 15
        %s292 = smul.addr %s291, 8
        %s293 = scalar_lea.vmem %s3, %s292
        %s294 = smul.u32 16, %s24
        %p295 = scmp.eq.s32.totalorder %s24, 0
        // Predicated region
        $region41: #{_forward_packed.1} parent=39 // pred_check
          %p296 = pneg %p295
        $region42: #{_forward_packed.1} parent=39 // pred_check_branch
          %298 = sbr.rel (%p296) target = $region44
        $region43: #{_forward_packed.1} parent=39 // pred_region
          %vm299 = vcmask 261120
          %300 = vst.msk [vmem:[#allocation2] sm:$0xff] %vm299, 0.0
        $region44: #{_forward_packed.1} parent=39 // pred_fallthru
          _
        %v301 = vld [vmem:[%s277] sm:$0xff]
        %v302 = vld [vmem:[%s282] sm:$0xff]
        %v303 = vld [vmem:[%s282 + $0x8] sm:$0xff]
        %v304 = vld [vmem:[%s282 + $0x10] sm:$0xff]
        %v305 = vld [vmem:[%s282 + $0x18] sm:$0xff]
        %v306 = vld [vmem:[%s282 + $0x20] sm:$0xff]
        %v307 = vld [vmem:[%s282 + $0x28] sm:$0xff]
        %v308 = vld [vmem:[%s282 + $0x30] sm:$0xff]
        %v309 = vld [vmem:[%s282 + $0x38] sm:$0xff]
        %v310 = vld [vmem:[%s287] sm:$0x3]
        %v312 = vperm.slane %v310, 0
        %v313 = vperm.slane %v310, 1
        %vm316 = vcmask 261120
        %v318 = vsel %vm316, %v301, 0
        %320 = vmatpush.msra.mxu0 0.0
        %321 = vmatpush.msra.mxu0 0.0
        %322 = vmatpush.msra.mxu0 0.0
        %323 = vmatpush.msra.mxu0 0.0
        %324 = vmatpush.msra.mxu0 0.0
        %325 = vmatpush.msra.mxu0 0.0
        %326 = vmatpush.msra.mxu0 0.0
        %327 = vmatpush.msra.mxu0 0.0
        %328 = vmatpush.msra.mxu0 0.0
        %329 = vmatpush.msra.mxu0 0.0
        %330 = vmatpush.msra.mxu0 0.0
        %331 = vmatpush.msra.mxu0 0.0
        %332 = vmatpush.msra.mxu0 %v308
        %333 = vmatpush.msra.mxu0 %v306
        %334 = vmatpush.msra.mxu0 %v304
        %335 = vmatpush.msra.mxu0 %v302
        %336 = vmatmul.f32.gmra.mxu0 %v318
        %v337 = vpop.f32.mrf.mxu0
        %v338 = vadd.f32 %v312, %v337
        %339 = vdwg.mxu0
        %340 = vmatpush.msra.mxu0 0.0
        %341 = vmatpush.msra.mxu0 0.0
        %342 = vmatpush.msra.mxu0 0.0
        %343 = vmatpush.msra.mxu0 0.0
        %344 = vmatpush.msra.mxu0 0.0
        %345 = vmatpush.msra.mxu0 0.0
        %346 = vmatpush.msra.mxu0 0.0
        %347 = vmatpush.msra.mxu0 0.0
        %348 = vmatpush.msra.mxu0 0.0
        %349 = vmatpush.msra.mxu0 0.0
        %350 = vmatpush.msra.mxu0 0.0
        %351 = vmatpush.msra.mxu0 0.0
        %352 = vmatpush.msra.mxu0 %v309
        %353 = vmatpush.msra.mxu0 %v307
        %354 = vmatpush.msra.mxu0 %v305
        %355 = vmatpush.msra.mxu0 %v303
        %356 = vmatmul.f32.gmra.mxu0 %v318
        %v357 = vpop.f32.mrf.mxu0
        %v358 = vadd.f32 %v313, %v357
        %359 = vdwg.mxu0
        %v360 = vxor.u32 %v358, 2147483648
        %v361 = vmul.f32 %v360, 1.442695
        %v362 = vpow.pop %v361
        %v363 = vadd.f32 %v362, 1.0
        %v364 = vrcp.pop %v363
        %v365 = vmul.f32 %v363, %v364
        %v366 = vsub.f32 1.0, %v365
        %v367 = vmul.f32 %v364, %v366
        %v368 = vadd.f32 %v364, %v367
        %vm369 = vweird.f32 %v363
        %vm370 = vweird.f32 %v364
        %vm371 = vmor %vm369, %vm370
        %v372 = vsel %vm371, %v364, %v368
        %v373 = vand.u32 2147483647, %v363
        %vm374 = vcmp.eq.f32.partialorder %v373, 8.507059e+37
        %v375 = vand.u32 %v363, 2147483648
        %v376 = vor.u32 1.1754944e-38, %v375
        %v377 = vsel %vm374, %v376, %v372
        %v378 = vmul.f32 1.0, %v377
        %v379 = vmul.f32 %v358, %v378
        %v380 = vmul.f32 %v338, %v379
        %v381 = vld [vmem:[#allocation2] sm:$0xff]
        %v382 = vld [vmem:[%s293] sm:$0xff]
        %v383 = vld [vmem:[%s293 + $0x8] sm:$0xff]
        %v384 = vld [vmem:[%s293 + $0x10] sm:$0xff]
        %v385 = vld [vmem:[%s293 + $0x18] sm:$0xff]
        %v386 = vld [vmem:[%s293 + $0x20] sm:$0xff]
        %v387 = vld [vmem:[%s293 + $0x28] sm:$0xff]
        %v388 = vld [vmem:[%s293 + $0x30] sm:$0xff]
        %v389 = vld [vmem:[%s293 + $0x38] sm:$0xff]
        %v390 = vld [vmem:[%s293 + $0x40] sm:$0xff]
        %v391 = vld [vmem:[%s293 + $0x48] sm:$0xff]
        %v392 = vld [vmem:[%s293 + $0x50] sm:$0xff]
        %v393 = vld [vmem:[%s293 + $0x58] sm:$0xff]
        %v394 = vld [vmem:[%s293 + $0x60] sm:$0xff]
        %v395 = vld [vmem:[%s293 + $0x68] sm:$0xff]
        %v396 = vld [vmem:[%s293 + $0x70] sm:$0xff]
        %v397 = vld [vmem:[%s293 + $0x78] sm:$0xff]
        %398 = vmatpush.msra.mxu0 %v397
        %399 = vmatpush.msra.mxu0 %v396
        %400 = vmatpush.msra.mxu0 %v395
        %401 = vmatpush.msra.mxu0 %v394
        %402 = vmatpush.msra.mxu0 %v393
        %403 = vmatpush.msra.mxu0 %v392
        %404 = vmatpush.msra.mxu0 %v391
        %405 = vmatpush.msra.mxu0 %v390
        %406 = vmatpush.msra.mxu0 %v389
        %407 = vmatpush.msra.mxu0 %v388
        %408 = vmatpush.msra.mxu0 %v387
        %409 = vmatpush.msra.mxu0 %v386
        %410 = vmatpush.msra.mxu0 %v385
        %411 = vmatpush.msra.mxu0 %v384
        %412 = vmatpush.msra.mxu0 %v383
        %413 = vmatpush.msra.mxu0 %v382
        %414 = vmatmul.f32.gmra.mxu0 %v380
        %v415 = vpop.f32.mrf.mxu0
        %v416 = vadd.f32 0.0, %v415
        %417 = vdwg.mxu0
        %v418 = vadd.f32 %v381, %v416
        %419 = vst.msk [vmem:[#allocation2] sm:$0xff] %vm316, %v418
        // Predicated region
        $region45: #{_forward_packed.1} parent=39 // pred_check
          %p420 = pneg %p295
        $region46: #{_forward_packed.1} parent=39 // pred_check_branch
          %422 = sbr.rel (%p420) target = $region48
        $region47: #{_forward_packed.1} parent=39 // pred_region
          %v423 = vld [vmem:[#allocation2] sm:$0xff]
          %v424 = vld [vmem:[%s4] sm:$0x1]
          %v426 = vperm.slane %v424, 0
          %v428 = vadd.f32 %v423, %v426
          %429 = vst.msk [vmem:[%s273] sm:$0xff] %vm316, %v428
        $region48: #{_forward_packed.1} parent=39 // pred_fallthru
          _
        %s430 = sand.u32 %s164, 1
        %s431 = scalar_lea.sflag [#allocation4], %s430
        %s432 = sand.u32 %s164, 1
        %s433 = smul.addr %s432, 8
        %s434 = scalar_lea.vmem [#allocation3], %s433
        // Predicated region
        $region49: #{_forward_packed.1} parent=39 // pred_check
          %p435 = pneg %p174
        $region50: #{_forward_packed.1} parent=39 // pred_check_branch
          %437 = sbr.rel (%p435) target = $region52
        $region51: #{_forward_packed.1} parent=39 // pred_region
          %439 = vsyncadd %s431, 0
          %s440 = smul.addr %s23, 8
          %s441 = scalar_lea.hbm %s5, %s440
          %s443 = sshll.u32 %s434, 4
          %s444 = int_to_ptr.vmem [resolvable:$true] %s443
          %s445 = sshll.u32 %s441, 4
          %s446 = int_to_ptr.hbm [resolvable:$true] %s445
          %448 = dma.vmem_to_hbm [thread:$0]  %s444, 128, %s446, %s431
        $region52: #{_forward_packed.1} parent=39 // pred_fallthru
          _
      $region40: #{_forward_packed.1} parent=5 // pred_fallthru
        _
      %p449 = scmp.le.s32.totalorder 2, %s14
      // Predicated region
      $region53: #{_forward_packed.1} parent=5 // pred_check
        %p450 = pneg %p449
      $region54: #{_forward_packed.1} parent=5 // pred_check_branch
        %452 = sbr.rel (%p450) target = $region56
      $region55: #{_forward_packed.1} parent=5 // pred_region
        %s453 = ssub.s32 %s14, 2
        // Predicated region
        $region57: #{_forward_packed.1} parent=55 // pred_check
          %p454 = pneg %p180
        $region58: #{_forward_packed.1} parent=55 // pred_check_branch
          %456 = sbr.rel (%p454) target = $region60
        $region59: #{_forward_packed.1} parent=55 // pred_region
          %s457 = sand.u32 %s165, 1
          %s458 = scalar_lea.sflag [#allocation4], %s457
          %s459 = sand.u32 %s165, 1
          %s460 = smul.addr %s459, 8
          %s461 = scalar_lea.vmem [#allocation3], %s460
          %463 = dma.done %s458, 128
        $region60: #{_forward_packed.1} parent=55 // pred_fallthru
          _
      $region56: #{_forward_packed.1} parent=5 // pred_fallthru
        _
    $region6: #{_forward_packed.1} parent=1 // loop_footer
      %s18 = sadd.s32 1, %s14
    $region7: #{_forward_packed.1} parent=1 // loop_footer_branch
      %13 = sbr.rel target = $region3
    $region8: #{_forward_packed.1} parent=1 // loop_exit
      _
    %464 = vsyncpa [#allocation4], 1
    %s465 = scalar_lea.sflag [#allocation4], 1
    %466 = vsyncpa %s465, 1

</llo_original>
